<compile_context>
chip_gen: v7x
topology: tpu7x:2x2x1
jax: 0.10.0
libtpu: 0.0.40
codegen_flags: <defaults>
</compile_context>

<pallas_src>
from functools import partial
from types import SimpleNamespace

import jax
import jax.numpy as jnp
import numpy as np
from jax.experimental import pallas as pl
from jax.experimental.pallas import tpu as pltpu

_EPS = 1e-7
# Rows (lanes) per grid step with the class-major repack.  At 16384 lanes the
# double-buffered VMEM footprint (cas + label + uncertainty blocks + the two
# lane-shaped accumulators) is ~4-5 MiB -> fits every generation's scoped VMEM
# (v5e 16 MiB default, v6e/v7x 32 MiB default).
_DEFAULT_MAX_ROW_TILE = 16384


# ---------------------------------------------------------------------------
# Fused kernel
# ---------------------------------------------------------------------------
def _asmloc_fused_kernel(lamb_fg, lamb_bg, lamb_abg, beta, n_rows, n_videos,
                         vidp_ref, fgc_ref, bgc_ref, cas_ref, lab_ref, unc_ref,
                         out_ref, acc_p_ref, acc_u_ref):
    """All ASMLoc sub-losses in one kernel.

    Grid: 1-D reduction over lane chunks of the class-major clip tensors
    (C+1, B*T).  The tiny video-level arrays stay VMEM-resident and are
    handled once at the last step together with the finalize.  Pseudo-instance
    partial sums accumulate in lane-shaped VMEM scratch; the last step does the
    single cross-lane reduce and writes a 1-D SMEM output:
        out = [fg_loss, bg_loss, abg_loss, pseudo_loss, total, 0, 0, 0]
    """
    step = pl.program_id(0)
    last = pl.num_programs(0) - 1

    @pl.when(step == 0)
    def _init():
        acc_p_ref[...] = jnp.zeros_like(acc_p_ref)
        acc_u_ref[...] = jnp.zeros_like(acc_u_ref)

    # ---- pseudo-instance partial sums for this lane chunk ------------------
    # cas/lab blocks are (C1, R): class axis on sublanes, rows on lanes.
    cas = cas_ref[...].astype(jnp.float32)
    lab = lab_ref[...].astype(jnp.float32)
    unc = unc_ref[...].astype(jnp.float32)                       # (1, R)

    log_cas = jnp.log(jnp.maximum(cas, _EPS))
    per_row = jnp.sum(log_cas * lab, axis=0, keepdims=True)      # (1, R) sublane reduce

    # Tail mask for the last (partially out-of-bounds) block.  Must gate BOTH
    # the exp(-u)*per_row term and the sum(u) term (OOB lanes hold garbage).
    R = per_row.shape[1]
    lane = jax.lax.broadcasted_iota(jnp.int32, (1, R), 1)
    valid = (step * R + lane) < n_rows
    per_row = jnp.where(valid, per_row, 0.0)
    unc = jnp.where(valid, unc, 0.0)

    acc_p_ref[...] += jnp.exp(-unc) * per_row                    # lane-wise VPU add
    acc_u_ref[...] += unc

    @pl.when(step == last)
    def _finalize():
        # fg_label = [vid_label, 0] / sum(vid_label), built on the VPU.
        # (No eps on the row sum -- exactly matches the torch reference; a
        #  video with zero positive labels yields inf/NaN there too.)
        vidp = vidp_ref[...].astype(jnp.float32)                 # (B, C+1), bg col = 0
        fg_w = vidp * (1.0 / jnp.sum(vidp, axis=1, keepdims=True))
        log_fg = jnp.log(jnp.maximum(fgc_ref[...].astype(jnp.float32), _EPS))
        log_bg = jnp.log(jnp.maximum(bgc_ref[...].astype(jnp.float32), _EPS))
        inv_b = 1.0 / n_videos
        # bg_label is exactly one-hot on the background (last) class.
        col = jax.lax.broadcasted_iota(jnp.int32, log_bg.shape, 1)
        is_bg = col == (log_bg.shape[1] - 1)
        fg_l = -jnp.sum(log_fg * fg_w) * inv_b
        bg_l = -jnp.sum(jnp.where(is_bg, log_bg, 0.0)) * inv_b
        abg_l = -jnp.sum(log_bg * fg_w) * inv_b

        inv_bt = 1.0 / n_rows
        pseudo = (-jnp.sum(acc_p_ref[...]) + beta * jnp.sum(acc_u_ref[...])) * inv_bt

        out_ref[0] = fg_l
        out_ref[1] = bg_l
        out_ref[2] = abg_l
        out_ref[3] = pseudo
        out_ref[4] = lamb_fg * fg_l + lamb_bg * bg_l + lamb_abg * abg_l + pseudo
        out_ref[5] = 0.0
        out_ref[6] = 0.0
        out_ref[7] = 0.0


# ---------------------------------------------------------------------------
# Wrapper around pallas_call (jit it; see _loss_fn_jit below)
# ---------------------------------------------------------------------------
def asmloc_loss_fused(vid_label, fg_cls, bg_cls, cas, pseudo_label, uncertainty,
                      *, lamb_fg, lamb_bg, lamb_abg, beta,
                      max_row_tile=_DEFAULT_MAX_ROW_TILE):
    # Tiny video-level tensors: cast to f32 in the wrapper (negligible).
    vid_label = vid_label.astype(jnp.float32)
    fg_cls = fg_cls.astype(jnp.float32)
    bg_cls = bg_cls.astype(jnp.float32)
    # Clip-level tensors keep their producer dtype (f32 or bf16) -- the kernel
    # casts to f32 after the DMA, so bf16 inputs halve HBM traffic.

    B = vid_label.shape[0]
    C1 = fg_cls.shape[1]
    T = cas.shape[1]
    n_rows = B * T

    # Zero-pad vid_label with the background column so it aligns with the
    # (C+1) class axis; normalization + bg one-hot shortcut live in-kernel.
    vid_pad = jnp.concatenate([vid_label, jnp.zeros((B, 1), jnp.float32)], axis=1)

    # Class-major, lane-dense repack: (B, T, C+1) -> (C+1, B*T); uncertainty
    # flattened to (1, B*T).  These are the only wrapper-side copies (small:
    # a few MB at most) and they make every in-kernel vector op lane-dense.
    casT = jnp.transpose(cas.reshape(n_rows, C1))
    labT = jnp.transpose(pseudo_label.reshape(n_rows, C1))
    uncF = uncertainty.reshape(1, n_rows)

    if n_rows <= max_row_tile:
        row_tile = n_rows            # full-extent block (any size allowed)
        num_steps = 1
    else:
        row_tile = max_row_tile      # multiple of 128
        num_steps = (n_rows + row_tile - 1) // row_tile  # tail masked in-kernel

    kernel = partial(_asmloc_fused_kernel, float(lamb_fg), float(lamb_bg),
                     float(lamb_abg), float(beta), n_rows, B)

    out = pl.pallas_call(
        kernel,
        out_shape=jax.ShapeDtypeStruct((8,), jnp.float32),
        grid_spec=pltpu.PrefetchScalarGridSpec(
            num_scalar_prefetch=0,
            grid=(num_steps,),
            in_specs=[
                pl.BlockSpec((B, C1), lambda i: (0, 0)),          # padded vid_label
                pl.BlockSpec((B, C1), lambda i: (0, 0)),          # fg_cls
                pl.BlockSpec((B, C1), lambda i: (0, 0)),          # bg_cls
                pl.BlockSpec((C1, row_tile), lambda i: (0, i)),   # cas (class-major)
                pl.BlockSpec((C1, row_tile), lambda i: (0, i)),   # pseudo label
                pl.BlockSpec((1, row_tile), lambda i: (0, i)),    # uncertainty
            ],
            out_specs=pl.BlockSpec(memory_space=pltpu.MemorySpace.SMEM),
            scratch_shapes=[
                pltpu.VMEM((1, row_tile), jnp.float32),   # sum exp(-u)*<log*label>
                pltpu.VMEM((1, row_tile), jnp.float32),   # sum u
            ],
        ),
        compiler_params=pltpu.CompilerParams(
            dimension_semantics=("arbitrary",),           # reduction axis
            vmem_limit_bytes=32 * 1024 * 1024),
    )(vid_pad, fg_cls, bg_cls, casT, labT, uncF)

    # [total, fg, bg, abg, pseudo]
    return out[4], out[0], out[1], out[2], out[3]


_loss_fn_jit = jax.jit(
    asmloc_loss_fused,
    static_argnames=("lamb_fg", "lamb_bg", "lamb_abg", "beta", "max_row_tile"))


# ---------------------------------------------------------------------------
# Module equivalent
# ---------------------------------------------------------------------------
class ASMLocLossPallas:
    """JAX/Pallas equivalent of the PyTorch ASMLoc_Loss forward pass."""

    def __init__(self, args, dataset='THUMOS14'):
        self.dataset = dataset
        self.lamb_fg = float(args.lamb_fg)
        self.lamb_bg = float(args.lamb_bg)
        self.lamb_abg = float(args.lamb_abg)
        self.beta = float(args.beta)

    def __call__(self, vid_label, fg_cls, bg_cls, temp_att, cas, fg_cas, bg_cas,
                 pseudo_instance_label=None, uncertainty=None):
        # temp_att / fg_cas / bg_cas are unused by the reference forward pass.
        total, fg, bg, abg, pseudo = _loss_fn_jit(
            vid_label, fg_cls, bg_cls, cas, pseudo_instance_label, uncertainty,
            lamb_fg=self.lamb_fg, lamb_bg=self.lamb_bg,
            lamb_abg=self.lamb_abg, beta=self.beta,
            max_row_tile=_DEFAULT_MAX_ROW_TILE)
        # Sub-losses stay on device as JAX scalars (no float()/item() host
        # syncs inside the step); call .item() outside if host values needed.
        loss_dict = {
            'fg_loss': fg,
            'bg_loss': bg,
            'abg_loss': abg,
            'pseudo_instance_loss': pseudo,
        }
        return total, loss_dict


# ---------------------------------------------------------------------------
# Pure-JAX reference (for the correctness check)
# ---------------------------------------------------------------------------
def _reference_all(args, vid_label, fg_cls, bg_cls, cas, pseudo_label, uncertainty):
    B = fg_cls.shape[0]
    fg_label = jnp.concatenate([vid_label, jnp.zeros((B, 1), vid_label.dtype)], axis=1)
    bg_label = jnp.concatenate([jnp.zeros_like(vid_label),
                                jnp.ones((B, 1), vid_label.dtype)], axis=1)
    fg_label = fg_label / jnp.sum(fg_label, axis=1, keepdims=True)
    bg_label = bg_label / jnp.sum(bg_label, axis=1, keepdims=True)

    def crit(inputs, label):
        return -jnp.mean(jnp.sum(jnp.log(jnp.maximum(inputs, 1e-7)) * label, axis=-1))

    fg_loss = crit(fg_cls, fg_label)
    bg_loss = crit(bg_cls, bg_label)
    abg_loss = crit(bg_cls, fg_label)
    loss1 = -jnp.mean(jnp.sum(jnp.exp(-uncertainty)
                              * jnp.log(jnp.maximum(cas, 1e-7)) * pseudo_label, axis=-1))
    loss2 = args.beta * jnp.mean(uncertainty)
    pseudo = loss1 + loss2
    total = (args.lamb_fg * fg_loss + args.lamb_bg * bg_loss
             + args.lamb_abg * abg_loss + pseudo)
    return total, fg_loss, bg_loss, abg_loss, pseudo


# ---------------------------------------------------------------------------
if __name__ == "__main__":
    args = SimpleNamespace(lamb_fg=1.0, lamb_bg=0.2, lamb_abg=0.2, beta=0.2)
    loss_fn = ASMLocLossPallas(args)

    def make_inputs(key, B, C, T):
        C1 = C + 1
        k1, k2, k3, k4, k5, k6 = jax.random.split(key, 6)
        vid_label = (jax.random.uniform(k1, (B, C)) > 0.5).astype(jnp.float32)
        vid_label = vid_label.at[:, 0].set(1.0)   # >=1 positive class per video
        fg_cls = jax.nn.softmax(jax.random.normal(k2, (B, C1)), axis=-1)
        bg_cls = jax.nn.softmax(jax.random.normal(k3, (B, C1)), axis=-1)
        cas = jax.nn.softmax(jax.random.normal(k4, (B, T, C1)), axis=-1)
        lab = jax.nn.softmax(5.0 * jax.random.normal(k5, (B, T, C1)), axis=-1)
        unc = jnp.abs(jax.random.normal(k6, (B, T, 1)))
        temp_att = jnp.zeros((B, T, 1), jnp.float32)   # unused by forward
        fg_cas = jnp.zeros((B, T, C1), jnp.float32)    # unused by forward
        bg_cas = jnp.zeros((B, T, C1), jnp.float32)    # unused by forward
        return vid_label, fg_cls, bg_cls, temp_att, cas, fg_cas, bg_cas, lab, unc

    key = jax.random.PRNGKey(0)
    k_small, k_big = jax.random.split(key)

    # --- small shapes (single grid step): B=2, C=4, T=8 ---------------------
    (vid, fgc, bgc, att, cas, fgcas, bgcas, lab, unc) = make_inputs(k_small, 2, 4, 8)
    loss, ld = loss_fn(vid, fgc, bgc, att, cas, fgcas, bgcas,
                       pseudo_instance_label=lab, uncertainty=unc)
    loss = jax.block_until_ready(loss)
    ref = _reference_all(args, vid, fgc, bgc, cas, lab, unc)
    np.testing.assert_allclose(np.asarray(loss), np.asarray(ref[0]), rtol=2e-5, atol=1e-5)
    for name, idx in (('fg_loss', 1), ('bg_loss', 2),
                      ('abg_loss', 3), ('pseudo_instance_loss', 4)):
        np.testing.assert_allclose(np.asarray(ld[name]), np.asarray(ref[idx]),
                                   rtol=2e-5, atol=1e-5)

    # --- multi-step tiled reduction + in-kernel tail masking -----------------
    # B*T = 1500 rows with a forced 256-lane tile -> 6 grid steps, last block
    # partially out-of-bounds (exercises the mask on both pseudo-loss terms).
    (vid, fgc, bgc, att, cas, fgcas, bgcas, lab, unc) = make_inputs(k_big, 2, 4, 750)
    total2, fg2, bg2, abg2, ps2 = _loss_fn_jit(
        vid, fgc, bgc, cas, lab, unc,
        lamb_fg=args.lamb_fg, lamb_bg=args.lamb_bg,
        lamb_abg=args.lamb_abg, beta=args.beta, max_row_tile=256)
    total2 = jax.block_until_ready(total2)
    ref2 = _reference_all(args, vid, fgc, bgc, cas, lab, unc)
    np.testing.assert_allclose(np.asarray(total2), np.asarray(ref2[0]),
                               rtol=1e-4, atol=1e-5)
    np.testing.assert_allclose(np.asarray(ps2), np.asarray(ref2[4]),
                               rtol=1e-4, atol=1e-5)

    print("KERNEL_OK")
</pallas_src>

<mosaic_0001>
module attributes {stable_mosaic.version = 11 : i64} {
  func.func @_asmloc_fused_kernel(%arg0: i32, %arg1: memref<2x5xf32, #tpu.memory_space<vmem>>, %arg2: memref<2x5xf32, #tpu.memory_space<vmem>>, %arg3: memref<2x5xf32, #tpu.memory_space<vmem>>, %arg4: memref<5x16xf32, #tpu.memory_space<vmem>>, %arg5: memref<5x16xf32, #tpu.memory_space<vmem>>, %arg6: memref<1x16xf32, #tpu.memory_space<vmem>>, %arg7: memref<8xf32, #tpu.memory_space<smem>>, %arg8: memref<1x16xf32, #tpu.memory_space<vmem>>, %arg9: memref<1x16xf32, #tpu.memory_space<vmem>>) attributes {dimension_semantics = [#tpu.dimension_semantics<arbitrary>], iteration_bounds = array<i64: 1>, scalar_prefetch = 0 : i64, scratch_operands = 2 : i64, tpu.core_type = #tpu.core_type<tc>, window_params = [{pipeline_mode = #tpu.pipeline_mode<synchronous>, transform_indices = @transform_0, window_bounds = array<i64: 2, 5>}, {pipeline_mode = #tpu.pipeline_mode<synchronous>, transform_indices = @transform_1, window_bounds = array<i64: 2, 5>}, {pipeline_mode = #tpu.pipeline_mode<synchronous>, transform_indices = @transform_2, window_bounds = array<i64: 2, 5>}, {transform_indices = @transform_3, window_bounds = array<i64: 5, 16>}, {transform_indices = @transform_4, window_bounds = array<i64: 5, 16>}, {transform_indices = @transform_5, window_bounds = array<i64: 1, 16>}, {transform_indices = @transform_6, window_bounds = array<i64: 8>}]} {
    %c0_i32 = arith.constant 0 : i32
    %0 = arith.cmpi eq, %arg0, %c0_i32 : i32
    %1 = arith.extui %0 : i1 to i32
    %c0_i32_0 = arith.constant 0 : i32
    %2 = arith.cmpi ne, %1, %c0_i32_0 : i32
    scf.if %2 {
      %cst_21 = arith.constant 0.000000e+00 : f32
      %35 = vector.broadcast %cst_21 : f32 to vector<1x16xf32>
      %c0_22 = arith.constant 0 : index
      %c0_23 = arith.constant 0 : index
      %36 = vector.load %arg8[%c0_22, %c0_23] : memref<1x16xf32, #tpu.memory_space<vmem>>, vector<1x16xf32>
      tpu.vector_store %arg8[%c0_22, %c0_23], %35 {strides = array<i32>} : memref<1x16xf32, #tpu.memory_space<vmem>>, vector<1x16xf32>,
      %cst_24 = arith.constant 0.000000e+00 : f32
      %37 = vector.broadcast %cst_24 : f32 to vector<1x16xf32>
      %c0_25 = arith.constant 0 : index
      %c0_26 = arith.constant 0 : index
      %38 = vector.load %arg9[%c0_25, %c0_26] : memref<1x16xf32, #tpu.memory_space<vmem>>, vector<1x16xf32>
      tpu.vector_store %arg9[%c0_25, %c0_26], %37 {strides = array<i32>} : memref<1x16xf32, #tpu.memory_space<vmem>>, vector<1x16xf32>,
    } else {
    }
    %c0 = arith.constant 0 : index
    %c0_1 = arith.constant 0 : index
    %3 = vector.load %arg4[%c0, %c0_1] : memref<5x16xf32, #tpu.memory_space<vmem>>, vector<5x16xf32>
    %c0_2 = arith.constant 0 : index
    %c0_3 = arith.constant 0 : index
    %4 = vector.load %arg5[%c0_2, %c0_3] : memref<5x16xf32, #tpu.memory_space<vmem>>, vector<5x16xf32>
    %c0_4 = arith.constant 0 : index
    %c0_5 = arith.constant 0 : index
    %5 = vector.load %arg6[%c0_4, %c0_5] : memref<1x16xf32, #tpu.memory_space<vmem>>, vector<1x16xf32>
    %cst = arith.constant 1.000000e-07 : f32
    %6 = vector.broadcast %cst : f32 to vector<5x16xf32>
    %7 = arith.maximumf %3, %6 : vector<5x16xf32>
    %8 = math.log %7 : vector<5x16xf32>
    %9 = arith.mulf %8, %4 : vector<5x16xf32>
    %cst_6 = arith.constant dense<0.000000e+00> : vector<16xf32>
    %10 = vector.multi_reduction <add>, %9, %cst_6 [0] : vector<5x16xf32> to vector<16xf32>
    %11 = vector.shape_cast %10 : vector<16xf32> to vector<1x16xf32>
    %12 = tpu.iota {dimensions = array<i32: 1>} : vector<1x16xi32>
    %c16_i32 = arith.constant 16 : i32
    %13 = arith.muli %arg0, %c16_i32 : i32
    %14 = vector.broadcast %13 : i32 to vector<1x16xi32>
    %15 = arith.addi %14, %12 : vector<1x16xi32>
    %c16_i32_7 = arith.constant 16 : i32
    %16 = vector.broadcast %c16_i32_7 : i32 to vector<1x16xi32>
    %17 = arith.cmpi slt, %15, %16 : vector<1x16xi32>
    %cst_8 = arith.constant 0.000000e+00 : f32
    %18 = vector.broadcast %cst_8 : f32 to vector<1x16xf32>
    %19 = arith.select %17, %11, %18 : vector<1x16xi1>, vector<1x16xf32>
    %cst_9 = arith.constant 0.000000e+00 : f32
    %20 = vector.broadcast %cst_9 : f32 to vector<1x16xf32>
    %21 = arith.select %17, %5, %20 : vector<1x16xi1>, vector<1x16xf32>
    %c0_10 = arith.constant 0 : index
    %c0_11 = arith.constant 0 : index
    %22 = vector.load %arg8[%c0_10, %c0_11] : memref<1x16xf32, #tpu.memory_space<vmem>>, vector<1x16xf32>
    %cst_12 = arith.constant 0.000000e+00 : f32
    %23 = vector.broadcast %cst_12 : f32 to vector<1x16xf32>
    %24 = arith.subf %23, %21 : vector<1x16xf32>
    %25 = math.exp %24 : vector<1x16xf32>
    %26 = arith.mulf %25, %19 : vector<1x16xf32>
    %27 = arith.addf %22, %26 : vector<1x16xf32>
    %c0_13 = arith.constant 0 : index
    %c0_14 = arith.constant 0 : index
    %28 = vector.load %arg8[%c0_13, %c0_14] : memref<1x16xf32, #tpu.memory_space<vmem>>, vector<1x16xf32>
    tpu.vector_store %arg8[%c0_13, %c0_14], %27 {strides = array<i32>} : memref<1x16xf32, #tpu.memory_space<vmem>>, vector<1x16xf32>,
    %c0_15 = arith.constant 0 : index
    %c0_16 = arith.constant 0 : index
    %29 = vector.load %arg9[%c0_15, %c0_16] : memref<1x16xf32, #tpu.memory_space<vmem>>, vector<1x16xf32>
    %30 = arith.addf %29, %21 : vector<1x16xf32>
    %c0_17 = arith.constant 0 : index
    %c0_18 = arith.constant 0 : index
    %31 = vector.load %arg9[%c0_17, %c0_18] : memref<1x16xf32, #tpu.memory_space<vmem>>, vector<1x16xf32>
    tpu.vector_store %arg9[%c0_17, %c0_18], %30 {strides = array<i32>} : memref<1x16xf32, #tpu.memory_space<vmem>>, vector<1x16xf32>,
    %c0_i32_19 = arith.constant 0 : i32
    %32 = arith.cmpi eq, %arg0, %c0_i32_19 : i32
    %33 = arith.extui %32 : i1 to i32
    %c0_i32_20 = arith.constant 0 : i32
    %34 = arith.cmpi ne, %33, %c0_i32_20 : i32
    scf.if %34 {
      %c0_21 = arith.constant 0 : index
      %c0_22 = arith.constant 0 : index
      %35 = vector.load %arg1[%c0_21, %c0_22] : memref<2x5xf32, #tpu.memory_space<vmem>>, vector<2x5xf32>
      %cst_23 = arith.constant dense<0.000000e+00> : vector<2xf32>
      %36 = vector.multi_reduction <add>, %35, %cst_23 [1] : vector<2x5xf32> to vector<2xf32>
      %37 = vector.shape_cast %36 : vector<2xf32> to vector<2x1xf32>
      %cst_24 = arith.constant 1.000000e+00 : f32
      %38 = vector.broadcast %cst_24 : f32 to vector<2x1xf32>
      %39 = arith.divf %38, %37 : vector<2x1xf32>
      %40 = vector.broadcast %39 : vector<2x1xf32> to vector<2x5xf32>
      %41 = arith.mulf %35, %40 : vector<2x5xf32>
      %c0_25 = arith.constant 0 : index
      %c0_26 = arith.constant 0 : index
      %42 = vector.load %arg2[%c0_25, %c0_26] : memref<2x5xf32, #tpu.memory_space<vmem>>, vector<2x5xf32>
      %cst_27 = arith.constant 1.000000e-07 : f32
      %43 = vector.broadcast %cst_27 : f32 to vector<2x5xf32>
      %44 = arith.maximumf %42, %43 : vector<2x5xf32>
      %45 = math.log %44 : vector<2x5xf32>
      %c0_28 = arith.constant 0 : index
      %c0_29 = arith.constant 0 : index
      %46 = vector.load %arg3[%c0_28, %c0_29] : memref<2x5xf32, #tpu.memory_space<vmem>>, vector<2x5xf32>
      %cst_30 = arith.constant 1.000000e-07 : f32
      %47 = vector.broadcast %cst_30 : f32 to vector<2x5xf32>
      %48 = arith.maximumf %46, %47 : vector<2x5xf32>
      %49 = math.log %48 : vector<2x5xf32>
      %50 = tpu.iota {dimensions = array<i32: 1>} : vector<2x5xi32>
      %c4_i32 = arith.constant 4 : i32
      %51 = vector.broadcast %c4_i32 : i32 to vector<2x5xi32>
      %52 = arith.cmpi eq, %50, %51 : vector<2x5xi32>
      %53 = arith.mulf %45, %41 : vector<2x5xf32>
      %54 = vector.shape_cast %53 : vector<2x5xf32> to vector<1x2x5xf32>
      %cst_31 = arith.constant dense<0.000000e+00> : vector<1xf32>
      %55 = vector.multi_reduction <add>, %54, %cst_31 [1, 2] : vector<1x2x5xf32> to vector<1xf32>
      %56 = vector.shape_cast %55 : vector<1xf32> to vector<1x1x1xf32>
      %57 = vector.extract %56[0, 0, 0] : f32 from vector<1x1x1xf32>
      %cst_32 = arith.constant 0.000000e+00 : f32
      %58 = arith.subf %cst_32, %57 : f32
      %cst_33 = arith.constant 5.000000e-01 : f32
      %59 = arith.mulf %58, %cst_33 : f32
      %cst_34 = arith.constant 0.000000e+00 : f32
      %60 = vector.broadcast %cst_34 : f32 to vector<2x5xf32>
      %61 = arith.select %52, %49, %60 : vector<2x5xi1>, vector<2x5xf32>
      %62 = vector.shape_cast %61 : vector<2x5xf32> to vector<1x2x5xf32>
      %cst_35 = arith.constant dense<0.000000e+00> : vector<1xf32>
      %63 = vector.multi_reduction <add>, %62, %cst_35 [1, 2] : vector<1x2x5xf32> to vector<1xf32>
      %64 = vector.shape_cast %63 : vector<1xf32> to vector<1x1x1xf32>
      %65 = vector.extract %64[0, 0, 0] : f32 from vector<1x1x1xf32>
      %cst_36 = arith.constant 0.000000e+00 : f32
      %66 = arith.subf %cst_36, %65 : f32
      %cst_37 = arith.constant 5.000000e-01 : f32
      %67 = arith.mulf %66, %cst_37 : f32
      %68 = arith.mulf %49, %41 : vector<2x5xf32>
      %69 = vector.shape_cast %68 : vector<2x5xf32> to vector<1x2x5xf32>
      %cst_38 = arith.constant dense<0.000000e+00> : vector<1xf32>
      %70 = vector.multi_reduction <add>, %69, %cst_38 [1, 2] : vector<1x2x5xf32> to vector<1xf32>
      %71 = vector.shape_cast %70 : vector<1xf32> to vector<1x1x1xf32>
      %72 = vector.extract %71[0, 0, 0] : f32 from vector<1x1x1xf32>
      %cst_39 = arith.constant 0.000000e+00 : f32
      %73 = arith.subf %cst_39, %72 : f32
      %cst_40 = arith.constant 5.000000e-01 : f32
      %74 = arith.mulf %73, %cst_40 : f32
      %c0_41 = arith.constant 0 : index
      %c0_42 = arith.constant 0 : index
      %75 = vector.load %arg8[%c0_41, %c0_42] : memref<1x16xf32, #tpu.memory_space<vmem>>, vector<1x16xf32>
      %76 = vector.shape_cast %75 : vector<1x16xf32> to vector<1x1x16xf32>
      %cst_43 = arith.constant dense<0.000000e+00> : vector<1xf32>
      %77 = vector.multi_reduction <add>, %76, %cst_43 [1, 2] : vector<1x1x16xf32> to vector<1xf32>
      %78 = vector.shape_cast %77 : vector<1xf32> to vector<1x1x1xf32>
      %79 = vector.extract %78[0, 0, 0] : f32 from vector<1x1x1xf32>
      %cst_44 = arith.constant 0.000000e+00 : f32
      %80 = arith.subf %cst_44, %79 : f32
      %c0_45 = arith.constant 0 : index
      %c0_46 = arith.constant 0 : index
      %81 = vector.load %arg9[%c0_45, %c0_46] : memref<1x16xf32, #tpu.memory_space<vmem>>, vector<1x16xf32>
      %82 = vector.shape_cast %81 : vector<1x16xf32> to vector<1x1x16xf32>
      %cst_47 = arith.constant dense<0.000000e+00> : vector<1xf32>
      %83 = vector.multi_reduction <add>, %82, %cst_47 [1, 2] : vector<1x1x16xf32> to vector<1xf32>
      %84 = vector.shape_cast %83 : vector<1xf32> to vector<1x1x1xf32>
      %85 = vector.extract %84[0, 0, 0] : f32 from vector<1x1x1xf32>
      %cst_48 = arith.constant 2.000000e-01 : f32
      %86 = arith.mulf %cst_48, %85 : f32
      %87 = arith.addf %80, %86 : f32
      %cst_49 = arith.constant 6.250000e-02 : f32
      %88 = arith.mulf %87, %cst_49 : f32
      %c0_50 = arith.constant 0 : index
      %89 = memref.load %arg7[%c0_50] : memref<8xf32, #tpu.memory_space<smem>>
      memref.store %59, %arg7[%c0_50] : memref<8xf32, #tpu.memory_space<smem>>
      %c1 = arith.constant 1 : index
      %90 = memref.load %arg7[%c1] : memref<8xf32, #tpu.memory_space<smem>>
      memref.store %67, %arg7[%c1] : memref<8xf32, #tpu.memory_space<smem>>
      %c2 = arith.constant 2 : index
      %91 = memref.load %arg7[%c2] : memref<8xf32, #tpu.memory_space<smem>>
      memref.store %74, %arg7[%c2] : memref<8xf32, #tpu.memory_space<smem>>
      %c3 = arith.constant 3 : index
      %92 = memref.load %arg7[%c3] : memref<8xf32, #tpu.memory_space<smem>>
      memref.store %88, %arg7[%c3] : memref<8xf32, #tpu.memory_space<smem>>
      %cst_51 = arith.constant 1.000000e+00 : f32
      %93 = arith.mulf %cst_51, %59 : f32
      %cst_52 = arith.constant 2.000000e-01 : f32
      %94 = arith.mulf %cst_52, %67 : f32
      %95 = arith.addf %93, %94 : f32
      %cst_53 = arith.constant 2.000000e-01 : f32
      %96 = arith.mulf %cst_53, %74 : f32
      %97 = arith.addf %95, %96 : f32
      %98 = arith.addf %97, %88 : f32
      %c4 = arith.constant 4 : index
      %99 = memref.load %arg7[%c4] : memref<8xf32, #tpu.memory_space<smem>>
      memref.store %98, %arg7[%c4] : memref<8xf32, #tpu.memory_space<smem>>
      %cst_54 = arith.constant 0.000000e+00 : f32
      %c5 = arith.constant 5 : index
      %100 = memref.load %arg7[%c5] : memref<8xf32, #tpu.memory_space<smem>>
      memref.store %cst_54, %arg7[%c5] : memref<8xf32, #tpu.memory_space<smem>>
      %cst_55 = arith.constant 0.000000e+00 : f32
      %c6 = arith.constant 6 : index
      %101 = memref.load %arg7[%c6] : memref<8xf32, #tpu.memory_space<smem>>
      memref.store %cst_55, %arg7[%c6] : memref<8xf32, #tpu.memory_space<smem>>
      %cst_56 = arith.constant 0.000000e+00 : f32
      %c7 = arith.constant 7 : index
      %102 = memref.load %arg7[%c7] : memref<8xf32, #tpu.memory_space<smem>>
      memref.store %cst_56, %arg7[%c7] : memref<8xf32, #tpu.memory_space<smem>>
    } else {
    }
    return
  }
  func.func @transform_0(%arg0: i32) -> (i32, i32) {
    %c0_i32 = arith.constant 0 : i32
    %c0_i32_0 = arith.constant 0 : i32
    %c0_i32_1 = arith.constant 0 : i32
    return %c0_i32, %c0_i32_0 : i32, i32
  }
  func.func @transform_1(%arg0: i32) -> (i32, i32) {
    %c0_i32 = arith.constant 0 : i32
    %c0_i32_0 = arith.constant 0 : i32
    %c0_i32_1 = arith.constant 0 : i32
    return %c0_i32, %c0_i32_0 : i32, i32
  }
  func.func @transform_2(%arg0: i32) -> (i32, i32) {
    %c0_i32 = arith.constant 0 : i32
    %c0_i32_0 = arith.constant 0 : i32
    %c0_i32_1 = arith.constant 0 : i32
    return %c0_i32, %c0_i32_0 : i32, i32
  }
  func.func @transform_3(%arg0: i32) -> (i32, i32) {
    %c0_i32 = arith.constant 0 : i32
    %c0_i32_0 = arith.constant 0 : i32
    return %c0_i32, %arg0 : i32, i32
  }
  func.func @transform_4(%arg0: i32) -> (i32, i32) {
    %c0_i32 = arith.constant 0 : i32
    %c0_i32_0 = arith.constant 0 : i32
    return %c0_i32, %arg0 : i32, i32
  }
  func.func @transform_5(%arg0: i32) -> (i32, i32) {
    %c0_i32 = arith.constant 0 : i32
    %c0_i32_0 = arith.constant 0 : i32
    return %c0_i32, %arg0 : i32, i32
  }
  func.func @transform_6(%arg0: i32) -> i32 {
    %c0_i32 = arith.constant 0 : i32
    %c0_i32_0 = arith.constant 0 : i32
    return %c0_i32 : i32
  }
}

</mosaic_0001>

<llo_original>
// kernel: asmloc_loss_fused.1
$region0: #{asmloc_loss_fused.1}
  #allocation0 [shape = 'u32[]', space=smem, size = 0x4, offset = 0x4, fixed_abs, tag = 'smem constant byte address 0x4 - core index']
  #allocation1 [shape = 'u32[144,128]{1,0:T(1,128)}', space=vmem, size = 0x12000, scoped, tag = 'internal scratch']
  #allocation2 [shape = 'f32[1,16]{1,0:T(1,128)}', space=vmem, size = 0x200, scoped, tag = 'scratch operand']
  #allocation3 [shape = 'f32[1,16]{1,0:T(1,128)}', space=vmem, size = 0x200, scoped, tag = 'scratch operand']
  %s0 = inlined_call_operand.vmem [shape: f32[2,5], index: 0, kind: input, shape index: {}]
  %s1 = inlined_call_operand.vmem [shape: f32[2,5], index: 1, kind: input, shape index: {}]
  %s2 = inlined_call_operand.vmem [shape: f32[2,5], index: 2, kind: input, shape index: {}]
  %s3 = inlined_call_operand.vmem [shape: f32[5,16], index: 3, kind: input, shape index: {}]
  %s4 = inlined_call_operand.vmem [shape: f32[5,16], index: 4, kind: input, shape index: {}]
  %s5 = inlined_call_operand.vmem [shape: f32[1,16], index: 5, kind: input, shape index: {}]
  %s6 = inlined_call_operand.vmem [shape: f32[8], index: 6, kind: output, shape index: {}]
  %s7 = sld [smem:[#allocation0]]
  $region42: #{asmloc_loss_fused.1} parent=0
    _
  %s9 = ssub.s32 1, %s7
  %s10 = scalar_select 0, %s9, %s7
  $region1: #{asmloc_loss_fused.1} parent=0
    #allocation4 [shape = 'u8[512]{0}', space=smem, size = 0x200, scoped, tag = 'output window, operand 0, single buffered']
    #allocation5 [shape = 's32[1]{0}', space=sflag, size = 0x4, scoped, tag = 'scoped memory for asmloc_loss_fused.1']
    %11 = vsyncpa [#allocation5], 0
    // Predicated region
    $region2: #{asmloc_loss_fused.1} parent=1 // pred_check
      _
    $region3: #{asmloc_loss_fused.1} parent=1 // pred_check_branch
      %13 = sbr.rel (0) target = $region5
    $region4: #{asmloc_loss_fused.1} parent=1 // pred_region
      _
    $region5: #{asmloc_loss_fused.1} parent=1 // pred_fallthru
      _
    // Predicated region
    $region6: #{asmloc_loss_fused.1} parent=1 // pred_check
      _
    $region7: #{asmloc_loss_fused.1} parent=1 // pred_check_branch
      %15 = sbr.rel (0) target = $region9
    $region8: #{asmloc_loss_fused.1} parent=1 // pred_region
      _
    $region9: #{asmloc_loss_fused.1} parent=1 // pred_fallthru
      _
    // Predicated region
    $region10: #{asmloc_loss_fused.1} parent=1 // pred_check
      _
    $region11: #{asmloc_loss_fused.1} parent=1 // pred_check_branch
      %17 = sbr.rel (0) target = $region13
    $region12: #{asmloc_loss_fused.1} parent=1 // pred_region
      _
    $region13: #{asmloc_loss_fused.1} parent=1 // pred_fallthru
      _
    // Predicated region
    $region14: #{asmloc_loss_fused.1} parent=1 // pred_check
      _
    $region15: #{asmloc_loss_fused.1} parent=1 // pred_check_branch
      %19 = sbr.rel (0) target = $region17
    $region16: #{asmloc_loss_fused.1} parent=1 // pred_region
      _
    $region17: #{asmloc_loss_fused.1} parent=1 // pred_fallthru
      _
    // Predicated region
    $region18: #{asmloc_loss_fused.1} parent=1 // pred_check
      _
    $region19: #{asmloc_loss_fused.1} parent=1 // pred_check_branch
      %21 = sbr.rel (0) target = $region21
    $region20: #{asmloc_loss_fused.1} parent=1 // pred_region
      _
    $region21: #{asmloc_loss_fused.1} parent=1 // pred_fallthru
      _
    // Predicated region
    $region22: #{asmloc_loss_fused.1} parent=1 // pred_check
      _
    $region23: #{asmloc_loss_fused.1} parent=1 // pred_check_branch
      %23 = sbr.rel (0) target = $region25
    $region24: #{asmloc_loss_fused.1} parent=1 // pred_region
      _
    $region25: #{asmloc_loss_fused.1} parent=1 // pred_fallthru
      _
    %p24 = scmp.eq.s32.totalorder 0, 0
    // Predicated region
    $region26: #{asmloc_loss_fused.1} parent=1 // pred_check
      %p25 = pneg %p24
    $region27: #{asmloc_loss_fused.1} parent=1 // pred_check_branch
      %27 = sbr.rel (%p25) target = $region29
    $region28: #{asmloc_loss_fused.1} parent=1 // pred_region
      %vm28 = vcmask 122880
      %29 = vst.msk [vmem:[#allocation2] sm:$0x1] %vm28, 0.0
      %30 = vst.msk [vmem:[#allocation3] sm:$0x1] %vm28, 0.0
    $region29: #{asmloc_loss_fused.1} parent=1 // pred_fallthru
      _
    %v31 = vld [vmem:[%s3] sm:$0x1f]
    %v32 = vld [vmem:[%s4] sm:$0x1f]
    %v33 = vld [vmem:[%s5] sm:$0x1]
    %v34 = vmax.f32 %v31, 1e-07
    %v35 = vlog2.pop %v34
    %v36 = vmul.f32 %v35, 0.6931472
    %v37 = vmul.f32 %v36, %v32
    %vm38 = vcmask 126976
    %v39 = vsel %vm38, %v37, 0.0
    %v40 = vrot.slane %v39, 4
    %v41 = vadd.f32 %v39, %v40
    %v42 = vrot.slane %v41, 2
    %v43 = vadd.f32 %v41, %v42
    %v44 = vrot.slane %v43, 1
    %v45 = vadd.f32 %v43, %v44
    %v46 = vlaneseq
    %v47 = vand.u32 %v46, 127
    %s48 = smul.u32 0, 16
    %v49 = vstv %s48
    %v50 = vadd.s32 %v49, %v47
    %vm51 = vcmp.lt.s32.totalorder %v50, 16
    %v52 = vsel %vm51, %v45, 0.0
    %v53 = vsel %vm51, %v33, 0.0
    %v54 = vld [vmem:[#allocation2] sm:$0x1]
    %v55 = vsub.f32 0.0, %v53
    %v56 = vmul.f32 %v55, 1.442695
    %v57 = vpow.pop %v56
    %v58 = vmul.f32 %v57, %v52
    %v59 = vadd.f32 %v54, %v58
    %vm60 = vcmask 122880
    %61 = vst.msk [vmem:[#allocation2] sm:$0x1] %vm60, %v59
    %v62 = vld [vmem:[#allocation3] sm:$0x1]
    %v63 = vadd.f32 %v62, %v53
    %64 = vst.msk [vmem:[#allocation3] sm:$0x1] %vm60, %v63
    // Predicated region
    $region30: #{asmloc_loss_fused.1} parent=1 // pred_check
      %p65 = pneg %p24
    $region31: #{asmloc_loss_fused.1} parent=1 // pred_check_branch
      %67 = sbr.rel (%p65) target = $region33
    $region32: #{asmloc_loss_fused.1} parent=1 // pred_region
      %v68 = vld [vmem:[%s0] sm:$0x3]
      %vm69 = vcmask 33792
      %v70 = vsel %vm69, %v68, 0.0
      %71 = vadd.xlane.f32.xlu0 %v70
      %v72 = vpop.xlane.xlu0 %71
      %v73 = vrcp.pop %v72
      %v74 = vmul.f32 1.0, %v73
      %v75 = vmul.f32 %v68, %v74
      %v76 = vld [vmem:[%s1] sm:$0x3]
      %v77 = vmax.f32 %v76, 1e-07
      %v78 = vlog2.pop %v77
      %v79 = vmul.f32 %v78, 0.6931472
      %v80 = vld [vmem:[%s2] sm:$0x3]
      %v81 = vmax.f32 %v80, 1e-07
      %v82 = vlog2.pop %v81
      %v83 = vmul.f32 %v82, 0.6931472
      %vm84 = vcmp.eq.s32.totalorder %v47, 4
      %v85 = vmul.f32 %v79, %v75
      %v86 = vsel %vm69, %v85, 0.0
      %87 = vadd.xlane.f32.xlu0 %v86
      %v88 = vpop.xlane.xlu0 %87
      %v89 = vrot.slane %v88, 4
      %v90 = vadd.f32 %v88, %v89
      %v91 = vrot.slane %v90, 2
      %v92 = vadd.f32 %v90, %v91
      %v93 = vrot.slane %v92, 1
      %v94 = vadd.f32 %v92, %v93
      %s95 = vtos %v94
      %s96 = ssub.f32 0.0, %s95
      %s97 = smul.f32 %s96, 0.5
      %v98 = vsel %vm84, %v83, 0.0
      %v99 = vsel %vm69, %v98, 0.0
      %100 = vadd.xlane.f32.xlu0 %v99
      %v101 = vpop.xlane.xlu0 %100
      %v102 = vrot.slane %v101, 4
      %v103 = vadd.f32 %v101, %v102
      %v104 = vrot.slane %v103, 2
      %v105 = vadd.f32 %v103, %v104
      %v106 = vrot.slane %v105, 1
      %v107 = vadd.f32 %v105, %v106
      %s108 = vtos %v107
      %s109 = ssub.f32 0.0, %s108
      %s110 = smul.f32 %s109, 0.5
      %v111 = vmul.f32 %v83, %v75
      %v112 = vsel %vm69, %v111, 0.0
      %113 = vadd.xlane.f32.xlu0 %v112
      %v114 = vpop.xlane.xlu0 %113
      %v115 = vrot.slane %v114, 4
      %v116 = vadd.f32 %v114, %v115
      %v117 = vrot.slane %v116, 2
      %v118 = vadd.f32 %v116, %v117
      %v119 = vrot.slane %v118, 1
      %v120 = vadd.f32 %v118, %v119
      %s121 = vtos %v120
      %s122 = ssub.f32 0.0, %s121
      %s123 = smul.f32 %s122, 0.5
      %v124 = vld [vmem:[#allocation2] sm:$0x1]
      %v125 = vsel %vm60, %v124, 0.0
      %126 = vadd.xlane.f32.xlu0 %v125
      %v127 = vpop.xlane.xlu0 %126
      %v128 = vrot.slane %v127, 4
      %v129 = vadd.f32 %v127, %v128
      %v130 = vrot.slane %v129, 2
      %v131 = vadd.f32 %v129, %v130
      %v132 = vrot.slane %v131, 1
      %v133 = vadd.f32 %v131, %v132
      %s134 = vtos %v133
      %s135 = ssub.f32 0.0, %s134
      %v136 = vld [vmem:[#allocation3] sm:$0x1]
      %v137 = vsel %vm60, %v136, 0.0
      %138 = vadd.xlane.f32.xlu0 %v137
      %v139 = vpop.xlane.xlu0 %138
      %v140 = vrot.slane %v139, 4
      %v141 = vadd.f32 %v139, %v140
      %v142 = vrot.slane %v141, 2
      %v143 = vadd.f32 %v141, %v142
      %v144 = vrot.slane %v143, 1
      %v145 = vadd.f32 %v143, %v144
      %s146 = vtos %v145
      %s147 = smul.f32 %s146, 0.2
      %s148 = sadd.f32 %s135, %s147
      %s149 = smul.f32 %s148, 0.0625
      %s150 = scalar_lea.smem [#allocation4], 0
      %151 = sst [smem:[%s150]] %s97
      %s152 = scalar_lea.smem [#allocation4], 1
      %153 = sst [smem:[%s152]] %s110
      %s154 = scalar_lea.smem [#allocation4], 2
      %155 = sst [smem:[%s154]] %s123
      %s156 = scalar_lea.smem [#allocation4], 3
      %157 = sst [smem:[%s156]] %s149
      %s158 = smul.f32 %s110, 0.2
      %s159 = sadd.f32 %s97, %s158
      %s160 = smul.f32 %s123, 0.2
      %s161 = sadd.f32 %s159, %s160
      %s162 = sadd.f32 %s161, %s149
      %s163 = scalar_lea.smem [#allocation4], 4
      %164 = sst [smem:[%s163]] %s162
      %s165 = scalar_lea.smem [#allocation4], 5
      %166 = sst [smem:[%s165]] 0.0
      %s167 = scalar_lea.smem [#allocation4], 6
      %168 = sst [smem:[%s167]] 0.0
      %s169 = scalar_lea.smem [#allocation4], 7
      %170 = sst [smem:[%s169]] 0.0
    $region33: #{asmloc_loss_fused.1} parent=1 // pred_fallthru
      _
    // Predicated region
    $region34: #{asmloc_loss_fused.1} parent=1 // pred_check
      _
    $region35: #{asmloc_loss_fused.1} parent=1 // pred_check_branch
      %172 = sbr.rel (0) target = $region37
    $region36: #{asmloc_loss_fused.1} parent=1 // pred_region
      %s174 = ssub.s32 16, 16
      %175 = vsyncadd [#allocation5], %s174
      %s177 = sshll.u32 %s6, 4
      %s178 = int_to_ptr.vmem [resolvable:$true] %s177
      %180 = dma.smem_to_vmem [#allocation4], 16, %s178, [#allocation5]
    $region37: #{asmloc_loss_fused.1} parent=1 // pred_fallthru
      _
    // Predicated region
    $region38: #{asmloc_loss_fused.1} parent=1 // pred_check
      _
    $region39: #{asmloc_loss_fused.1} parent=1 // pred_check_branch
      %182 = sbr.rel (0) target = $region41
    $region40: #{asmloc_loss_fused.1} parent=1 // pred_region
      %183 = dma.done [#allocation5], 16
    $region41: #{asmloc_loss_fused.1} parent=1 // pred_fallthru
      _
    %184 = sfence
    %185 = vsyncpa [#allocation5], 1

</llo_original>
